<compile_context>
chip_gen: v5e
topology: v5e:2x2
jax: 0.10.0
libtpu: 0.0.40
codegen_flags: <defaults>
</compile_context>

<pallas_src>
import functools

import jax
import jax.numpy as jnp
import numpy as np
from jax.experimental import pallas as pl
from jax.experimental.pallas import tpu as pltpu

_MIB = 1 << 20


def _physical_vmem_bytes():
    """Best-effort physical VMEM query; conservative (v7x = 64 MiB) fallback."""
    try:
        info = pltpu.get_tpu_info()
        vmem = getattr(info, "vmem_capacity_bytes", None)
        if vmem:
            return int(vmem)
    except Exception:
        pass
    return 64 * _MIB


# ---------------------------------------------------------------------------
# Fused single-sweep kernel (grid over batch)
# ---------------------------------------------------------------------------
def _fca_fused_kernel(a_ref, wt_ref, b_ref, x_ref, o_ref, *, inv_hw):
    """out = relu(x * prelu(W_eff^T @ mean_hw(x) + b_eff)) for one batch elem.

    a_ref : (1, 1)     PReLU slope (broadcast, no scalar extraction)
    wt_ref: (C, C)     W_eff^T (column form -> no transposes needed in-kernel)
    b_ref : (C, 1)     b_eff column
    x_ref : (1, C, HW) input slab;  o_ref: (1, C, HW) output slab
    """
    x = x_ref[0]                                                       # (C, HW)
    pooled = jnp.sum(x, axis=1, keepdims=True) * jnp.float32(inv_hw)   # (C, 1)
    y = jnp.dot(wt_ref[...], pooled,
                preferred_element_type=jnp.float32) + b_ref[...]       # (C, 1)
    y = jnp.where(y > 0.0, y, a_ref[...] * y)                          # PReLU
    o_ref[0] = jnp.maximum(x * y, 0.0)                                 # scale+ReLU


# ---------------------------------------------------------------------------
# Fallback kernels (multi-pass)
# ---------------------------------------------------------------------------
def _pool_sum_kernel(x_ref, sum_ref, acc_ref):
    """Per-row sums over HW, accumulated in a (t_r, 128) VMEM lane scratch.

    x_ref:   (t_r, t_hw) tile of x viewed as (R, HW)
    sum_ref: (t_r, 1)    output (written only on last hw step)
    acc_ref: (t_r, 128)  scratch accumulator
    """
    @pl.when(pl.program_id(1) == 0)
    def _():
        acc_ref[...] = jnp.zeros_like(acc_ref)

    t_hw = x_ref.shape[1]
    part = x_ref[:, 0:128]
    for s in range(1, t_hw // 128):            # static slices, pure VPU adds
        part = part + x_ref[:, s * 128:(s + 1) * 128]
    acc_ref[...] += part

    @pl.when(pl.program_id(1) == pl.num_programs(1) - 1)
    def _():
        sum_ref[...] = jnp.sum(acc_ref[...], axis=1, keepdims=True)


def _rescale_kernel(x_ref, y_ref, o_ref):
    """out = relu(x * y_row) on (t_r, t_hw) tiles; y_ref is (t_r, 1)."""
    o_ref[...] = jnp.maximum(x_ref[...] * y_ref[...], 0.0)


# ---------------------------------------------------------------------------
# Helpers
# ---------------------------------------------------------------------------
def _pick_tile(dim, align, max_tile, min_blocks=1):
    """Largest tile <= max_tile that is a multiple of `align`, divides `dim`
    (dim must already be a multiple of `align`), and leaves >= min_blocks grid
    steps whenever possible."""
    cap = max_tile
    if min_blocks > 1 and dim >= align * min_blocks:
        cap = min(cap, dim // min_blocks)
    cap = max(align, cap - cap % align)
    t = min(dim, cap)
    t -= t % align
    if t <= 0:
        t = align
    while dim % t != 0:
        t -= align
    return t


def _fold_affine(params):
    """Fold fc -> 1x1 conv -> BN(inference) into (W_eff, b_eff); return PReLU slope."""
    fc_w = params["fc_w"].astype(jnp.float32)                    # (NC, C)
    fc_b = params["fc_b"].astype(jnp.float32)                    # (NC,)
    conv_w = params["conv_w"][:, :, 0, 0].astype(jnp.float32)    # (C, NC)
    conv_b = params["conv_b"].astype(jnp.float32)                # (C,)
    eps = jnp.float32(1e-5)
    bn_s = params["bn_gamma"].astype(jnp.float32) * jax.lax.rsqrt(
        params["bn_var"].astype(jnp.float32) + eps)              # (C,)
    w_eff = (fc_w.T @ conv_w.T) * bn_s[None, :]                  # (C, C)
    b_eff = ((fc_b @ conv_w.T + conv_b
              - params["bn_mean"].astype(jnp.float32)) * bn_s
             + params["bn_beta"].astype(jnp.float32))            # (C,)
    prelu_a = params["prelu_a"].reshape(-1)[0].astype(jnp.float32)
    return w_eff, b_eff, prelu_a


# ---------------------------------------------------------------------------
# Wrapper
# ---------------------------------------------------------------------------
def fca_forward(x_nchw, params, *, force_multipass=False):
    """x_nchw: (N, C, H, W) float32.  Returns (N, C, H, W) float32."""
    N, C, H, W = x_nchw.shape
    HW = H * W
    R = N * C

    x = x_nchw.astype(jnp.float32)
    w_eff, b_eff, prelu_a = _fold_affine(params)

    # TODO(synk): Dropout2d(p=0.01) is identity at inference; training-mode
    # channel dropout is not implemented.

    phys_vmem = _physical_vmem_bytes()
    slab_bytes = C * HW * 4
    # double-buffered input + output slabs + weights/bias/slope
    fused_working = 4 * slab_bytes + (C * C + 2 * C + 8) * 4
    use_fused = (not force_multipass) and fused_working <= int(0.75 * phys_vmem)

    if use_fused:
        # ----- Fused single-sweep path: one HBM read + one HBM write --------
        x3 = x.reshape(N, C, HW)
        vmem_limit = int(min(max(fused_working + 8 * _MIB, 32 * _MIB),
                             phys_vmem - 4 * _MIB))
        cost = pl.CostEstimate(
            flops=int(2 * N * C * C + 3 * N * C * HW),
            transcendentals=0,
            bytes_accessed=int(2 * N * C * HW * 4 + C * C * 4))
        out = pl.pallas_call(
            functools.partial(_fca_fused_kernel, inv_hw=1.0 / HW),
            out_shape=jax.ShapeDtypeStruct((N, C, HW), jnp.float32),
            grid_spec=pltpu.PrefetchScalarGridSpec(
                num_scalar_prefetch=0,
                grid=(N,),
                in_specs=[
                    pl.BlockSpec((1, 1), lambda n: (0, 0)),          # prelu a
                    pl.BlockSpec((C, C), lambda n: (0, 0)),          # W_eff^T
                    pl.BlockSpec((C, 1), lambda n: (0, 0)),          # b_eff col
                    pl.BlockSpec((1, C, HW), lambda n: (n, 0, 0)),   # x slab
                ],
                out_specs=pl.BlockSpec((1, C, HW), lambda n: (n, 0, 0)),
            ),
            compiler_params=pltpu.CompilerParams(
                dimension_semantics=("parallel",),
                vmem_limit_bytes=vmem_limit),
            cost_estimate=cost,
        )(prelu_a.reshape(1, 1), w_eff.T, b_eff.reshape(C, 1), x3)
        return out.reshape(N, C, H, W)

    # ----- Fallback: pool kernel + tiny jnp matmul + rescale kernel ---------
    x2 = x.reshape(R, HW)
    R_pad = ((R + 7) // 8) * 8
    HW_pad = ((HW + 127) // 128) * 128
    if (R_pad, HW_pad) != (R, HW):
        # zero pad is sum-safe; padded rows/cols are discarded after pass 3
        x2p = jnp.zeros((R_pad, HW_pad), jnp.float32).at[:R, :HW].set(x2)
    else:
        x2p = x2

    t_r = _pick_tile(R_pad, 8, 512, min_blocks=2)    # >= 2 r blocks for megacore
    t_hw = _pick_tile(HW_pad, 128, 4096)
    vmem_limit = int(min(48 * _MIB, phys_vmem - 4 * _MIB))

    # Pass 1: per-row (batch*channel) sums over HW
    pool_cost = pl.CostEstimate(
        flops=int(R_pad * HW_pad), transcendentals=0,
        bytes_accessed=int(R_pad * HW_pad * 4 + R_pad * 4))
    pooled_sum = pl.pallas_call(
        _pool_sum_kernel,
        out_shape=jax.ShapeDtypeStruct((R_pad, 1), jnp.float32),
        grid_spec=pltpu.PrefetchScalarGridSpec(
            num_scalar_prefetch=0,
            grid=(R_pad // t_r, HW_pad // t_hw),
            in_specs=[pl.BlockSpec((t_r, t_hw), lambda r, h: (r, h))],
            out_specs=pl.BlockSpec((t_r, 1), lambda r, h: (r, 0)),
            scratch_shapes=[pltpu.VMEM((t_r, 128), jnp.float32)],
        ),
        compiler_params=pltpu.CompilerParams(
            dimension_semantics=("parallel", "arbitrary"),
            vmem_limit_bytes=vmem_limit),
        cost_estimate=pool_cost,
    )(x2p)

    # Tiny attention matmul + PReLU in plain jnp (no dedicated pallas_call).
    pooled = pooled_sum[:R, 0].reshape(N, C) * jnp.float32(1.0 / HW)
    y = pooled @ w_eff + b_eff[None, :]
    y = jnp.where(y > 0.0, y, prelu_a * y)
    y_rows = y.reshape(R, 1)
    if R_pad != R:
        y_rows = jnp.zeros((R_pad, 1), jnp.float32).at[:R].set(y_rows)

    # Pass 2: tiled channel rescale + ReLU
    # TODO(synk): could alias x2p -> out via input_output_aliases if the caller
    # donates x; not done here since donation is not guaranteed.
    rescale_cost = pl.CostEstimate(
        flops=int(2 * R_pad * HW_pad), transcendentals=0,
        bytes_accessed=int(2 * R_pad * HW_pad * 4 + R_pad * 4))
    out = pl.pallas_call(
        _rescale_kernel,
        out_shape=jax.ShapeDtypeStruct((R_pad, HW_pad), jnp.float32),
        grid_spec=pltpu.PrefetchScalarGridSpec(
            num_scalar_prefetch=0,
            grid=(R_pad // t_r, HW_pad // t_hw),
            in_specs=[
                pl.BlockSpec((t_r, t_hw), lambda r, h: (r, h)),   # x
                pl.BlockSpec((t_r, 1), lambda r, h: (r, 0)),      # y row scale
            ],
            out_specs=pl.BlockSpec((t_r, t_hw), lambda r, h: (r, h)),
        ),
        compiler_params=pltpu.CompilerParams(
            dimension_semantics=("parallel", "parallel"),
            vmem_limit_bytes=vmem_limit),
        cost_estimate=rescale_cost,
    )(x2p, y_rows)

    if (R_pad, HW_pad) != (R, HW):
        out = out[:R, :HW]
    return out.reshape(N, C, H, W)


# ---------------------------------------------------------------------------
# Pure-JAX reference (inference-mode BN / dropout)
# ---------------------------------------------------------------------------
def _reference(x, p):
    pooled = jnp.mean(x, axis=(2, 3))                             # (N, C)
    y = pooled @ p["fc_w"].T + p["fc_b"]                          # (N, NC)
    y = y @ p["conv_w"][:, :, 0, 0].T + p["conv_b"]               # (N, C)
    y = (y - p["bn_mean"]) / jnp.sqrt(p["bn_var"] + 1e-5) * p["bn_gamma"] + p["bn_beta"]
    a = p["prelu_a"][0]
    y = jnp.where(y > 0, y, a * y)
    return jnp.maximum(x * y[:, :, None, None], 0.0)


if __name__ == "__main__":
    # Small shapes consistent with the module: in_channels == out_channels
    # (required by expand_as), modest num_classes.
    N, C, H, W = 2, 4, 16, 16
    NUM_CLASSES = 8

    key = jax.random.PRNGKey(0)
    kx, k1, k2, k3, k4 = jax.random.split(key, 5)

    x = jax.random.normal(kx, (N, C, H, W), dtype=jnp.float32)

    params = {
        "fc_w": jax.random.normal(k1, (NUM_CLASSES, C), jnp.float32) * 0.1,
        "fc_b": jax.random.normal(k2, (NUM_CLASSES,), jnp.float32) * 0.1,
        "conv_w": jax.random.normal(k3, (C, NUM_CLASSES, 1, 1), jnp.float32) * 0.1,
        "conv_b": jax.random.normal(k4, (C,), jnp.float32) * 0.1,
        # BatchNorm2d default init, inference-mode running stats
        "bn_gamma": jnp.ones((C,), jnp.float32),
        "bn_beta": jnp.zeros((C,), jnp.float32),
        "bn_mean": jnp.zeros((C,), jnp.float32),
        "bn_var": jnp.ones((C,), jnp.float32),
        # PReLU default single slope 0.25
        "prelu_a": jnp.full((1,), 0.25, jnp.float32),
    }

    ref = _reference(x, params)

    # Fused single-sweep path (default for these shapes)
    out_fused = jax.block_until_ready(fca_forward(x, params))
    np.testing.assert_allclose(np.asarray(out_fused), np.asarray(ref),
                               rtol=1e-5, atol=1e-5)

    # Multi-pass fallback path (exercised explicitly for coverage)
    out_mp = jax.block_until_ready(fca_forward(x, params, force_multipass=True))
    np.testing.assert_allclose(np.asarray(out_mp), np.asarray(ref),
                               rtol=1e-5, atol=1e-5)

    print("KERNEL_OK")
</pallas_src>

<mosaic_0001>
module attributes {stable_mosaic.version = 11 : i64} {
  func.func @_fca_fused_kernel(%arg0: i32, %arg1: memref<1x1xf32, #tpu.memory_space<vmem>>, %arg2: memref<4x4xf32, #tpu.memory_space<vmem>>, %arg3: memref<4x1xf32, #tpu.memory_space<vmem>>, %arg4: memref<1x4x256xf32, #tpu.memory_space<vmem>>, %arg5: memref<1x4x256xf32, #tpu.memory_space<vmem>>) attributes {dimension_semantics = [#tpu.dimension_semantics<parallel>], iteration_bounds = array<i64: 2>, scalar_prefetch = 0 : i64, scratch_operands = 0 : i64, tpu.core_type = #tpu.core_type<tc>, window_params = [{pipeline_mode = #tpu.pipeline_mode<synchronous>, transform_indices = @transform_0, window_bounds = array<i64: 1, 1>}, {pipeline_mode = #tpu.pipeline_mode<synchronous>, transform_indices = @transform_1, window_bounds = array<i64: 4, 4>}, {pipeline_mode = #tpu.pipeline_mode<synchronous>, transform_indices = @transform_2, window_bounds = array<i64: 4, 1>}, {transform_indices = @transform_3, window_bounds = array<i64: 1, 4, 256>}, {transform_indices = @transform_4, window_bounds = array<i64: 1, 4, 256>}]} {
    %c0 = arith.constant 0 : index
    %c0_0 = arith.constant 0 : index
    %c0_1 = arith.constant 0 : index
    %0 = vector.load %arg4[%c0, %c0_0, %c0_1] : memref<1x4x256xf32, #tpu.memory_space<vmem>>, vector<1x4x256xf32>
    %1 = vector.shape_cast %0 : vector<1x4x256xf32> to vector<4x256xf32>
    %cst = arith.constant dense<0.000000e+00> : vector<4xf32>
    %2 = vector.multi_reduction <add>, %1, %cst [1] : vector<4x256xf32> to vector<4xf32>
    %3 = vector.shape_cast %2 : vector<4xf32> to vector<4x1xf32>
    %cst_2 = arith.constant 3.906250e-03 : f32
    %4 = vector.broadcast %cst_2 : f32 to vector<4x1xf32>
    %5 = arith.mulf %3, %4 : vector<4x1xf32>
    %c0_3 = arith.constant 0 : index
    %c0_4 = arith.constant 0 : index
    %6 = vector.load %arg2[%c0_3, %c0_4] : memref<4x4xf32, #tpu.memory_space<vmem>>, vector<4x4xf32>
    %cst_5 = arith.constant dense<0.000000e+00> : vector<4x1xf32>
    %7 = tpu.matmul %6, %5, %cst_5 {dimension_numbers = #tpu.dot_dimension_numbers<[1], [0], [0], [1], [0, 0, 1, 1], [], []>} : vector<4x4xf32>, vector<4x1xf32>, vector<4x1xf32> -> vector<4x1xf32>
    %c0_6 = arith.constant 0 : index
    %c0_7 = arith.constant 0 : index
    %8 = vector.load %arg3[%c0_6, %c0_7] : memref<4x1xf32, #tpu.memory_space<vmem>>, vector<4x1xf32>
    %9 = arith.addf %7, %8 : vector<4x1xf32>
    %cst_8 = arith.constant 0.000000e+00 : f32
    %10 = vector.broadcast %cst_8 : f32 to vector<4x1xf32>
    %11 = arith.cmpf ogt, %9, %10 : vector<4x1xf32>
    %c0_9 = arith.constant 0 : index
    %c0_10 = arith.constant 0 : index
    %12 = vector.load %arg1[%c0_9, %c0_10] : memref<1x1xf32, #tpu.memory_space<vmem>>, vector<1x1xf32>
    %13 = vector.broadcast %12 : vector<1x1xf32> to vector<4x1xf32>
    %14 = arith.mulf %13, %9 : vector<4x1xf32>
    %15 = arith.select %11, %9, %14 : vector<4x1xi1>, vector<4x1xf32>
    %16 = vector.broadcast %15 : vector<4x1xf32> to vector<4x256xf32>
    %17 = arith.mulf %1, %16 : vector<4x256xf32>
    %cst_11 = arith.constant 0.000000e+00 : f32
    %18 = vector.broadcast %cst_11 : f32 to vector<4x256xf32>
    %19 = arith.maximumf %17, %18 : vector<4x256xf32>
    %c0_12 = arith.constant 0 : index
    %c0_13 = arith.constant 0 : index
    %c0_14 = arith.constant 0 : index
    %20 = vector.load %arg5[%c0_12, %c0_13, %c0_14] : memref<1x4x256xf32, #tpu.memory_space<vmem>>, vector<1x4x256xf32>
    %21 = vector.shape_cast %20 : vector<1x4x256xf32> to vector<4x256xf32>
    %22 = vector.shape_cast %19 : vector<4x256xf32> to vector<1x4x256xf32>
    tpu.vector_store %arg5[%c0_12, %c0_13, %c0_14], %22 {strides = array<i32>} : memref<1x4x256xf32, #tpu.memory_space<vmem>>, vector<1x4x256xf32>,
    return
  }
  func.func @transform_0(%arg0: i32) -> (i32, i32) {
    %c0_i32 = arith.constant 0 : i32
    %c0_i32_0 = arith.constant 0 : i32
    %c0_i32_1 = arith.constant 0 : i32
    return %c0_i32, %c0_i32_0 : i32, i32
  }
  func.func @transform_1(%arg0: i32) -> (i32, i32) {
    %c0_i32 = arith.constant 0 : i32
    %c0_i32_0 = arith.constant 0 : i32
    %c0_i32_1 = arith.constant 0 : i32
    return %c0_i32, %c0_i32_0 : i32, i32
  }
  func.func @transform_2(%arg0: i32) -> (i32, i32) {
    %c0_i32 = arith.constant 0 : i32
    %c0_i32_0 = arith.constant 0 : i32
    %c0_i32_1 = arith.constant 0 : i32
    return %c0_i32, %c0_i32_0 : i32, i32
  }
  func.func @transform_3(%arg0: i32) -> (i32, i32, i32) {
    %c0_i32 = arith.constant 0 : i32
    %c0_i32_0 = arith.constant 0 : i32
    %c0_i32_1 = arith.constant 0 : i32
    return %arg0, %c0_i32, %c0_i32_0 : i32, i32, i32
  }
  func.func @transform_4(%arg0: i32) -> (i32, i32, i32) {
    %c0_i32 = arith.constant 0 : i32
    %c0_i32_0 = arith.constant 0 : i32
    %c0_i32_1 = arith.constant 0 : i32
    return %arg0, %c0_i32, %c0_i32_0 : i32, i32, i32
  }
}

</mosaic_0001>

<llo_original>
// kernel: tpu_custom_call.1
$region0: #{tpu_custom_call.1}
  #allocation0 [shape = 'u32[]', space=smem, size = 0x4, offset = 0x4, fixed_abs, tag = 'smem constant byte address 0x4 - core index']
  #allocation1 [shape = 'u32[72,128]{1,0:T(1,128)}', space=vmem, size = 0x9000, scoped, tag = 'internal scratch']
  #allocation2 [shape = 'f32[1,1]{1,0:T(1,128)S(1)}', space=vmem, size = 0x200, scoped, tag = 'scoped memory for tpu_custom_call.1']
  %s0 = inlined_call_operand.<no memory space> [shape: f32[1,1], index: 0, kind: input, shape index: {}]
  %s1 = inlined_call_operand.vmem [shape: f32[4,4], index: 1, kind: input, shape index: {}]
  %s2 = inlined_call_operand.vmem [shape: f32[4,1], index: 2, kind: input, shape index: {}]
  %s3 = inlined_call_operand.hbm [shape: f32[2,4,256], index: 3, kind: input, shape index: {}]
  %s4 = inlined_call_operand.hbm [shape: f32[2,4,256], index: 4, kind: output, shape index: {}]
  %s5 = sld [smem:[#allocation0]]
  $region53: #{tpu_custom_call.1} parent=0
    _
  %s7 = ssub.s32 1, %s5
  %s8 = scalar_select 0, %s7, %s5
  %v9 = vstv %s0
  %10 = vst [vmem:[#allocation2] sm:$0x1] %v9
  $region1: #{tpu_custom_call.1} parent=0
    #allocation3 [shape = 'u8[8192]{0}', space=vmem, size = 0x2000, scoped, tag = 'input window, operand 3']
    #allocation4 [shape = 's32[2]{0}', space=sflag, size = 0x8, scoped, tag = 'scoped memory for tpu_custom_call.1']
    #allocation5 [shape = 's32[2]{0}', space=sflag, size = 0x8, scoped, tag = 'scoped memory for tpu_custom_call.1']
    #allocation6 [shape = 'u8[8192]{0}', space=vmem, size = 0x2000, scoped, tag = 'output window, operand 0']
    %11 = vsyncpa [#allocation4], 0
    %s12 = scalar_lea.sflag [#allocation4], 1
    %13 = vsyncpa %s12, 0
    %14 = vsyncpa [#allocation5], 0
    %s15 = scalar_lea.sflag [#allocation5], 1
    %16 = vsyncpa %s15, 0
    loop: start=0, step=1, limit=4
    $region2: #{tpu_custom_call.1} parent=1 // loop_pre_header
      _
    $region3: #{tpu_custom_call.1} parent=1 // loop_header
      %s18 = sphi 0, %s22
      %p19 = scmp.ge.s32.totalorder %s18, 4
      %s26 = sphi 0, %s26
      %s28 = sphi 0, %s26
      %s29 = sphi 0, %s28
      %s43 = sphi 0, %s29
      %s47 = sphi 0, %s47
      %s49 = sphi 0, %s47
      %s50 = sphi 0, %s49
      %s64 = sphi 0, %s50
      %s68 = sphi 0, %s68
      %s70 = sphi 0, %s68
      %s71 = sphi 0, %s70
      %s85 = sphi 0, %s71
      %s91 = sphi 0, %s93
      %s94 = sphi 0, %s91
      %s95 = sphi 0, %s94
      %s111 = sphi 0, %s95
      %s117 = sphi 0, %s119
      %s120 = sphi 0, %s117
      %s121 = sphi 0, %s120
      %s137 = sphi 0, %s121
    $region4: #{tpu_custom_call.1} parent=1 // loop_header_branch
      %21 = sbr.rel (%p19) target = $region8
    $region5: #{tpu_custom_call.1} parent=1 // loop_body
      %s23 = ssub.s32 %s18, 1
      %s24 = ssub.s32 %s18, 2
      %s25 = sadd.s32 %s18, 1
      %s27 = sadd.s32 %s26, 1
      %p30 = scmp.eq.s32.totalorder %s18, 1
      %p31 = scmp.ne.s32.totalorder %s26, %s28
      %p32 = scmp.eq.s32.totalorder %s18, 0
      %p33 = por %p31, %p32
      %p34 = scmp.ne.s32.totalorder %s26, %s28
      %p35 = scmp.eq.s32.totalorder %s23, 1
      %p36 = por %p34, %p35
      %p37 = scmp.ne.s32.totalorder %s28, %s29
      %p38 = scmp.eq.s32.totalorder %s23, 0
      %p39 = por %p37, %p38
      %p40 = scmp.ne.s32.totalorder %s28, %s29
      %p41 = scmp.eq.s32.totalorder %s24, 1
      %p42 = por %p40, %p41
      %p44 = scmp.ne.s32.totalorder %s29, %s43
      %p45 = scmp.eq.s32.totalorder %s24, 0
      %p46 = por %p44, %p45
      %s48 = sadd.s32 %s47, 1
      %p51 = scmp.eq.s32.totalorder %s18, 1
      %p52 = scmp.ne.s32.totalorder %s47, %s49
      %p53 = scmp.eq.s32.totalorder %s18, 0
      %p54 = por %p52, %p53
      %p55 = scmp.ne.s32.totalorder %s47, %s49
      %p56 = scmp.eq.s32.totalorder %s23, 1
      %p57 = por %p55, %p56
      %p58 = scmp.ne.s32.totalorder %s49, %s50
      %p59 = scmp.eq.s32.totalorder %s23, 0
      %p60 = por %p58, %p59
      %p61 = scmp.ne.s32.totalorder %s49, %s50
      %p62 = scmp.eq.s32.totalorder %s24, 1
      %p63 = por %p61, %p62
      %p65 = scmp.ne.s32.totalorder %s50, %s64
      %p66 = scmp.eq.s32.totalorder %s24, 0
      %p67 = por %p65, %p66
      %s69 = sadd.s32 %s68, 1
      %p72 = scmp.eq.s32.totalorder %s18, 1
      %p73 = scmp.ne.s32.totalorder %s68, %s70
      %p74 = scmp.eq.s32.totalorder %s18, 0
      %p75 = por %p73, %p74
      %p76 = scmp.ne.s32.totalorder %s68, %s70
      %p77 = scmp.eq.s32.totalorder %s23, 1
      %p78 = por %p76, %p77
      %p79 = scmp.ne.s32.totalorder %s70, %s71
      %p80 = scmp.eq.s32.totalorder %s23, 0
      %p81 = por %p79, %p80
      %p82 = scmp.ne.s32.totalorder %s70, %s71
      %p83 = scmp.eq.s32.totalorder %s24, 1
      %p84 = por %p82, %p83
      %p86 = scmp.ne.s32.totalorder %s71, %s85
      %p87 = scmp.eq.s32.totalorder %s24, 0
      %p88 = por %p86, %p87
      %s89 = ssub.s32 %s18, %s25
      %p90 = scmp.eq.s32.totalorder %s89, 0
      %s92 = sadd.s32 %s91, 1
      %s93 = scalar_select %p90, %s91, %s92
      %p96 = pneg %p90
      %p97 = scmp.eq.s32.totalorder %s18, 1
      %p98 = por %p96, %p97
      %p99 = scmp.ne.s32.totalorder %s91, %s94
      %p100 = scmp.eq.s32.totalorder %s18, 0
      %p101 = por %p99, %p100
      %p102 = scmp.ne.s32.totalorder %s91, %s94
      %p103 = scmp.eq.s32.totalorder %s23, 1
      %p104 = por %p102, %p103
      %p105 = scmp.ne.s32.totalorder %s94, %s95
      %p106 = scmp.eq.s32.totalorder %s23, 0
      %p107 = por %p105, %p106
      %p108 = scmp.ne.s32.totalorder %s94, %s95
      %p109 = scmp.eq.s32.totalorder %s24, 1
      %p110 = por %p108, %p109
      %p112 = scmp.ne.s32.totalorder %s95, %s111
      %p113 = scmp.eq.s32.totalorder %s24, 0
      %p114 = por %p112, %p113
      %s115 = ssub.s32 %s18, %s25
      %p116 = scmp.eq.s32.totalorder %s115, 0
      %s118 = sadd.s32 %s117, 1
      %s119 = scalar_select %p116, %s117, %s118
      %p122 = pneg %p116
      %p123 = scmp.eq.s32.totalorder %s18, 1
      %p124 = por %p122, %p123
      %p125 = scmp.ne.s32.totalorder %s117, %s120
      %p126 = scmp.eq.s32.totalorder %s18, 0
      %p127 = por %p125, %p126
      %p128 = scmp.ne.s32.totalorder %s117, %s120
      %p129 = scmp.eq.s32.totalorder %s23, 1
      %p130 = por %p128, %p129
      %p131 = scmp.ne.s32.totalorder %s120, %s121
      %p132 = scmp.eq.s32.totalorder %s23, 0
      %p133 = por %p131, %p132
      %p134 = scmp.ne.s32.totalorder %s120, %s121
      %p135 = scmp.eq.s32.totalorder %s24, 1
      %p136 = por %p134, %p135
      %p138 = scmp.ne.s32.totalorder %s121, %s137
      %p139 = scmp.eq.s32.totalorder %s24, 0
      %p140 = por %p138, %p139
      %p141 = scmp.le.s32.totalorder 1, %s18
      %p142 = scmp.lt.s32.totalorder %s18, 3
      %p143 = pnand %p141, %p142
      %p144 = pneg %p143
      // Predicated region
      $region9: #{tpu_custom_call.1} parent=5 // pred_check
        _
      $region10: #{tpu_custom_call.1} parent=5 // pred_check_branch
        %146 = sbr.rel (%p143) target = $region12
      $region11: #{tpu_custom_call.1} parent=5 // pred_region
        %s147 = ssub.s32 %s18, 1
        // Predicated region
        $region13: #{tpu_custom_call.1} parent=11 // pred_check
          %p148 = pneg %p39
        $region14: #{tpu_custom_call.1} parent=11 // pred_check_branch
          %150 = sbr.rel (%p148) target = $region16
        $region15: #{tpu_custom_call.1} parent=11 // pred_region
          _
        $region16: #{tpu_custom_call.1} parent=11 // pred_fallthru
          _
        // Predicated region
        $region17: #{tpu_custom_call.1} parent=11 // pred_check
          %p151 = pneg %p60
        $region18: #{tpu_custom_call.1} parent=11 // pred_check_branch
          %153 = sbr.rel (%p151) target = $region20
        $region19: #{tpu_custom_call.1} parent=11 // pred_region
          _
        $region20: #{tpu_custom_call.1} parent=11 // pred_fallthru
          _
        // Predicated region
        $region21: #{tpu_custom_call.1} parent=11 // pred_check
          %p154 = pneg %p81
        $region22: #{tpu_custom_call.1} parent=11 // pred_check_branch
          %156 = sbr.rel (%p154) target = $region24
        $region23: #{tpu_custom_call.1} parent=11 // pred_region
          _
        $region24: #{tpu_custom_call.1} parent=11 // pred_fallthru
          _
      $region12: #{tpu_custom_call.1} parent=5 // pred_fallthru
        _
      %p157 = scmp.lt.s32.totalorder %s18, 2
      // Predicated region
      $region25: #{tpu_custom_call.1} parent=5 // pred_check
        %p158 = pneg %p157
      $region26: #{tpu_custom_call.1} parent=5 // pred_check_branch
        %160 = sbr.rel (%p158) target = $region28
      $region27: #{tpu_custom_call.1} parent=5 // pred_region
        // Predicated region
        $region29: #{tpu_custom_call.1} parent=27 // pred_check
          %p161 = pneg %p101
        $region30: #{tpu_custom_call.1} parent=27 // pred_check_branch
          %163 = sbr.rel (%p161) target = $region32
        $region31: #{tpu_custom_call.1} parent=27 // pred_region
          %s164 = sand.u32 %s91, 1
          %s165 = scalar_lea.sflag [#allocation4], %s164
          %s166 = sand.u32 %s91, 1
          %s167 = smul.addr %s166, 8
          %s168 = scalar_lea.vmem [#allocation3], %s167
          %170 = vsyncadd %s165, 0
          %s171 = smul.addr %s18, 2
          %s172 = smul.addr %s171, 4
          %s173 = scalar_lea.hbm %s3, %s172
          %s175 = sshll.u32 %s173, 4
          %s176 = int_to_ptr.hbm [resolvable:$true] %s175
          %s177 = sshll.u32 %s168, 4
          %s178 = int_to_ptr.vmem [resolvable:$true] %s177
          %180 = dma.hbm_to_vmem [thread:$0]  %s176, 128, %s178, %s165
        $region32: #{tpu_custom_call.1} parent=27 // pred_fallthru
          _
      $region28: #{tpu_custom_call.1} parent=5 // pred_fallthru
        _
      %p181 = scmp.le.s32.totalorder 1, %s18
      %p182 = scmp.lt.s32.totalorder %s18, 3
      %p183 = pnand %p181, %p182
      %p184 = pneg %p183
      // Predicated region
      $region33: #{tpu_custom_call.1} parent=5 // pred_check
        _
      $region34: #{tpu_custom_call.1} parent=5 // pred_check_branch
        %186 = sbr.rel (%p183) target = $region36
      $region35: #{tpu_custom_call.1} parent=5 // pred_region
        %s187 = ssub.s32 %s18, 1
        %s188 = sand.u32 %s94, 1
        %s189 = scalar_lea.sflag [#allocation4], %s188
        %s190 = sand.u32 %s94, 1
        %s191 = smul.addr %s190, 8
        %s192 = scalar_lea.vmem [#allocation3], %s191
        // Predicated region
        $region37: #{tpu_custom_call.1} parent=35 // pred_check
          %p193 = pneg %p107
        $region38: #{tpu_custom_call.1} parent=35 // pred_check_branch
          %195 = sbr.rel (%p193) target = $region40
        $region39: #{tpu_custom_call.1} parent=35 // pred_region
          %197 = dma.done %s189, 128
        $region40: #{tpu_custom_call.1} parent=35 // pred_fallthru
          _
        %p198 = pneg %p39
        %p199 = pneg %p36
        %p200 = pneg %p60
        %p201 = pneg %p57
        %p202 = pneg %p81
        %p203 = pneg %p78
        %s204 = sand.u32 %s94, 1
        %s205 = scalar_lea.sflag [#allocation4], %s204
        %s206 = sand.u32 %s94, 1
        %s207 = smul.addr %s206, 8
        %s208 = scalar_lea.vmem [#allocation3], %s207
        %p209 = pneg %p107
        %p210 = pneg %p104
        %p211 = pneg %p133
        %p212 = pneg %p130
        %s213 = sand.u32 %s120, 1
        %s214 = scalar_lea.sflag [#allocation5], %s213
        %s215 = sand.u32 %s120, 1
        %s216 = smul.addr %s215, 8
        %s217 = scalar_lea.vmem [#allocation6], %s216
        %v218 = vld [vmem:[%s192] sm:$0xff]
        %220 = vst [vmem:[#allocation1] ss:$2 sm:$0xff] %v218
        %v221 = vld.sshfl [vmem:[#allocation1] sm:$0xff pattern:$0x75316420]
        %v222 = vld.sshfl [vmem:[#allocation1 + $0x8] sm:$0xff pattern:$0x75316420]
        %vm225 = vcmask 1043456
        %v226 = vsel %vm225, %v221, 0.0
        %v227 = vsel %vm225, %v222, 0.0
        %v228 = vadd.f32 %v226, %v227
        %229 = vadd.xlane.f32.xlu0 %v228
        %v230 = vpop.xlane.xlu0 %229
        %v231 = vmul.f32 %v230, 0.00390625
        %v232 = vld [vmem:[%s1] sm:$0xf]
        %v233 = vld [vmem:[%s2] sm:$0xf]
        %vm234 = vcmask 31744
        %v236 = vsel %vm234, %v232, 0
        %v239 = vsel %vm225, %v231, 0
        %241 = vmatpush.msra.mxu0 0.0
        %242 = vmatpush.msra.mxu0 0.0
        %243 = vmatpush.msra.mxu0 0.0
        %244 = vmatpush.msra.mxu0 0.0
        %245 = vmatpush.msra.mxu0 0.0
        %246 = vmatpush.msra.mxu0 0.0
        %247 = vmatpush.msra.mxu0 0.0
        %248 = vmatpush.msra.mxu0 0.0
        %249 = vmatpush.msra.mxu0 0.0
        %250 = vmatpush.msra.mxu0 0.0
        %251 = vmatpush.msra.mxu0 0.0
        %252 = vmatpush.msra.mxu0 0.0
        %253 = vmatpush.msra.mxu0 0.0
        %254 = vmatpush.msra.mxu0 0.0
        %255 = vmatpush.msra.mxu0 0.0
        %256 = vmatpush.msra.mxu0 %v239
        %257 = vmatmul.f32.gmra.mxu0 %v236
        %v258 = vpop.f32.mrf.mxu0
        %v259 = vadd.f32 %v233, %v258
        %260 = vdwg.mxu0
        %vm261 = vcmp.gt.f32.partialorder %v259, 0.0
        %v262 = vld [vmem:[#allocation2] sm:$0x1]
        %v264 = vperm.slane %v262, 0
        %v266 = vmul.f32 %v264, %v259
        %v267 = vsel %vm261, %v259, %v266
        %269 = vset.pattern.permute.xlu0 0
        %270 = vperm.xlu0 %269, %v267
        %v271 = vpop.permute.xlu0 %270
        %v273 = vunpack.c.l.s4 839922192
        %v274 = vunpack.c.0.s8 %v273
        %v275 = vperm.slane %v271, %v274
        %v277 = vmul.f32 %v218, %v275
        %v278 = vmax.f32 %v277, 0.0
        %279 = vst [vmem:[%s217] sm:$0xff] %v278
        %s280 = sand.u32 %s120, 1
        %s281 = scalar_lea.sflag [#allocation5], %s280
        %s282 = sand.u32 %s120, 1
        %s283 = smul.addr %s282, 8
        %s284 = scalar_lea.vmem [#allocation6], %s283
        // Predicated region
        $region41: #{tpu_custom_call.1} parent=35 // pred_check
          %p285 = pneg %p130
        $region42: #{tpu_custom_call.1} parent=35 // pred_check_branch
          %287 = sbr.rel (%p285) target = $region44
        $region43: #{tpu_custom_call.1} parent=35 // pred_region
          %289 = vsyncadd %s281, 0
          %s290 = smul.addr %s23, 2
          %s291 = smul.addr %s290, 4
          %s292 = scalar_lea.hbm %s4, %s291
          %s294 = sshll.u32 %s284, 4
          %s295 = int_to_ptr.vmem [resolvable:$true] %s294
          %s296 = sshll.u32 %s292, 4
          %s297 = int_to_ptr.hbm [resolvable:$true] %s296
          %299 = dma.vmem_to_hbm [thread:$0]  %s295, 128, %s297, %s281
        $region44: #{tpu_custom_call.1} parent=35 // pred_fallthru
          _
      $region36: #{tpu_custom_call.1} parent=5 // pred_fallthru
        _
      %p300 = scmp.le.s32.totalorder 2, %s18
      // Predicated region
      $region45: #{tpu_custom_call.1} parent=5 // pred_check
        %p301 = pneg %p300
      $region46: #{tpu_custom_call.1} parent=5 // pred_check_branch
        %303 = sbr.rel (%p301) target = $region48
      $region47: #{tpu_custom_call.1} parent=5 // pred_region
        %s304 = ssub.s32 %s18, 2
        // Predicated region
        $region49: #{tpu_custom_call.1} parent=47 // pred_check
          %p305 = pneg %p136
        $region50: #{tpu_custom_call.1} parent=47 // pred_check_branch
          %307 = sbr.rel (%p305) target = $region52
        $region51: #{tpu_custom_call.1} parent=47 // pred_region
          %s308 = sand.u32 %s121, 1
          %s309 = scalar_lea.sflag [#allocation5], %s308
          %s310 = sand.u32 %s121, 1
          %s311 = smul.addr %s310, 8
          %s312 = scalar_lea.vmem [#allocation6], %s311
          %314 = dma.done %s309, 128
        $region52: #{tpu_custom_call.1} parent=47 // pred_fallthru
          _
      $region48: #{tpu_custom_call.1} parent=5 // pred_fallthru
        _
    $region6: #{tpu_custom_call.1} parent=1 // loop_footer
      %s22 = sadd.s32 1, %s18
    $region7: #{tpu_custom_call.1} parent=1 // loop_footer_branch
      %17 = sbr.rel target = $region3
    $region8: #{tpu_custom_call.1} parent=1 // loop_exit
      _
    %315 = vsyncpa [#allocation4], 1
    %s316 = scalar_lea.sflag [#allocation4], 1
    %317 = vsyncpa %s316, 1
    %318 = vsyncpa [#allocation5], 1
    %s319 = scalar_lea.sflag [#allocation5], 1
    %320 = vsyncpa %s319, 1

</llo_original>
